<compile_context>
chip_gen: v7x
topology: tpu7x:2x2x1
jax: 0.10.0
libtpu: 0.0.40
codegen_flags: <defaults>
</compile_context>

<pallas_src>
import functools
import numpy as np
import jax
import jax.numpy as jnp
from jax.experimental import pallas as pl
from jax.experimental.pallas import tpu as pltpu


def _round_up(x, m):
    return (x + m - 1) // m * m


# -----------------------------------------------------------------------------
# Fused direct-conv kernel (stride 1), one image per grid step.
# -----------------------------------------------------------------------------
def _conv_kernel(x_ref, w_ref, b_ref, *rest, k, H, W, pad, Wrow, Ho, Wo,
                 Hout, Wout, pool, act, slope, pn, eps, c_real,
                 has_fade, has_stat):
    idx = 0
    if has_fade:
        alpha_ref = rest[idx]
        old_ref = rest[idx + 1]
        idx += 2
    if has_stat:
        stat_ref = rest[idx]
        border_ref = rest[idx + 1]
        idx += 2
    o_ref = rest[idx]
    idx += 1
    xpad_ref = rest[idx]
    idx += 1
    if pool:
        pool_ref = rest[idx]

    Cin = x_ref.shape[-1]
    Cpi = xpad_ref.shape[-1]
    Cpo = b_ref.shape[-1]
    M = Ho * Wrow

    # -- stage 1: spatial zero-pad + channel lane-pad into a VMEM scratch whose
    #    rows are Wrow (multiple of 8) wide.  Done in-kernel: no wrapper pad op.
    xpad_ref[...] = jnp.zeros(xpad_ref.shape, xpad_ref.dtype)
    xpad_ref[pad:pad + H, pad:pad + W, :Cin] = x_ref[0]

    # -- stage 2: k*k shifted whole-plane matmuls, f32 accumulation.  With the
    #    flat (row-major) view, tap (dh, dw) is just a slice starting at
    #    dh*Wrow + dw; out-of-row garbage only lands in cropped columns w >= Wo.
    acc = None
    for dh in range(k):
        blk = xpad_ref[dh:dh + Ho + 1]                    # (Ho+1, Wrow, Cpi)
        flat = blk.reshape((Ho + 1) * Wrow, Cpi)
        for dw in range(k):
            d = jnp.dot(flat[dw:dw + M], w_ref[dh * k + dw],
                        preferred_element_type=jnp.float32)
            acc = d if acc is None else acc + d

    # -- stage 3: whole-plane epilogue (bias, minibatch-std term, lrelu, pn).
    y = acc + b_ref[...]                                  # (M, Cpo) f32
    if has_stat:
        # spatially constant minibatch-std channel folded in as stat * border
        y = y + stat_ref[0, :, 0:1] * border_ref[...]
    if act:
        y = jnp.where(y > 0, y, slope * y)
    if pn:
        # padded lanes are exactly zero, so the lane sum equals the real sum;
        # divide by the real channel count.
        y = y * jax.lax.rsqrt(
            jnp.sum(y * y, axis=-1, keepdims=True) * (1.0 / c_real) + eps)
    y3 = y.reshape(Ho, Wrow, Cpo)

    # -- stage 4: fused 2x2 average pool (VPU adds + strided loads, no MXU),
    #    fused fade-in, one lane-dense store.
    if pool:
        rp = y3.reshape(Hout, 2, Wrow, Cpo)
        pool_ref[...] = rp[:, 0] + rp[:, 1]               # row-pair sums
        yo = 0.25 * (pool_ref[:, pl.ds(0, Wout, stride=2), :]
                     + pool_ref[:, pl.ds(1, Wout, stride=2), :])
    else:
        yo = y3[:, :Wo, :]
    if has_fade:
        a = alpha_ref[...]                                # (1, 1)
        yo = a * old_ref[0].astype(jnp.float32) + (1.0 - a) * yo
    o_ref[0] = yo.astype(o_ref.dtype)


def pack_conv(w, b, *, gain=2 ** 0.5, fan_in=None):
    """Pack a PyTorch-layout conv weight (Cout, Cin, k, k) into the lane-padded
    (k*k, Cin_pad, Cout_pad) bf16 operand + (1, Cout_pad) f32 bias used by the
    fused conv kernel (equalized-LR scale baked in)."""
    Cout, Cin, k, _ = w.shape
    if fan_in is None:
        fan_in = Cin * k * k
    scale = gain / np.sqrt(fan_in)
    Cpi = _round_up(Cin, 128)
    Cpo = _round_up(Cout, 128)
    wr = jnp.transpose(w, (2, 3, 1, 0)).reshape(k * k, Cin, Cout) * scale
    wk = jnp.zeros((k * k, Cpi, Cpo), jnp.float32).at[:, :Cin, :Cout].set(wr)
    bp = jnp.zeros((1, Cpo), jnp.float32).at[0, :Cout].set(b)
    return wk.astype(jnp.bfloat16), bp, k, Cout


def conv2d_fused(x, wk, bp, *, k, pad=0, act=False, slope=0.2, pn=False,
                 c_real=None, eps=1e-8, pool=False,
                 fade_old=None, alpha=1.0, stat=None, border=None,
                 out_dtype=jnp.bfloat16):
    """Equalized-LR stride-1 conv with fully fused epilogue (NHWC)."""
    N, H, W, Cin = x.shape
    kk, Cpi, Cpo = wk.shape
    assert kk == k * k and _round_up(Cin, 128) == Cpi
    Hp, Wp = H + 2 * pad, W + 2 * pad
    Ho, Wo = Hp - k + 1, Wp - k + 1
    Wrow = _round_up(Wp, 8)                   # flat row width (sublane aligned)
    Hout, Wout = (Ho // 2, Wo // 2) if pool else (Ho, Wo)

    inputs = [x.astype(jnp.bfloat16), wk, bp]
    in_specs = [
        pl.BlockSpec((1, H, W, Cin), lambda n: (n, 0, 0, 0)),
        pl.BlockSpec((k * k, Cpi, Cpo), lambda n: (0, 0, 0)),
        pl.BlockSpec((1, Cpo), lambda n: (0, 0)),
    ]
    has_fade = fade_old is not None
    if has_fade:
        inputs.append(jnp.asarray(alpha, jnp.float32).reshape(1, 1))
        in_specs.append(pl.BlockSpec((1, 1), lambda n: (0, 0)))
        inputs.append(fade_old.astype(jnp.bfloat16))
        in_specs.append(pl.BlockSpec((1, Hout, Wout, Cpo),
                                     lambda n: (n, 0, 0, 0)))
    has_stat = stat is not None
    if has_stat:
        inputs.append(stat.astype(jnp.float32))                  # (N, 1, 128)
        in_specs.append(pl.BlockSpec((1, 1, 128), lambda n: (n, 0, 0)))
        inputs.append(border.astype(jnp.float32))                # (Ho*Wrow, Cpo)
        in_specs.append(pl.BlockSpec((Ho * Wrow, Cpo), lambda n: (0, 0)))

    scratch = [pltpu.VMEM((Hp + 1, Wrow, Cpi), jnp.bfloat16)]
    if pool:
        scratch.append(pltpu.VMEM((Hout, Wrow, Cpo), jnp.float32))

    kern = functools.partial(
        _conv_kernel, k=k, H=H, W=W, pad=pad, Wrow=Wrow, Ho=Ho, Wo=Wo,
        Hout=Hout, Wout=Wout, pool=pool, act=act, slope=slope, pn=pn, eps=eps,
        c_real=float(c_real if c_real is not None else Cpo),
        has_fade=has_fade, has_stat=has_stat)

    # Blocks are per-image and tiny (<~10 MiB incl. scratch) -> well under the
    # scoped-VMEM defaults on v5e/v6e/v7x; no vmem_limit override needed.
    return pl.pallas_call(
        kern,
        out_shape=jax.ShapeDtypeStruct((N, Hout, Wout, Cpo), out_dtype),
        grid=(N,),
        in_specs=in_specs,
        out_specs=pl.BlockSpec((1, Hout, Wout, Cpo), lambda n: (n, 0, 0, 0)),
        scratch_shapes=scratch,
        compiler_params=pltpu.CompilerParams(
            dimension_semantics=("parallel",)),
    )(*inputs)


# -----------------------------------------------------------------------------
# Minibatch-stddev statistic: one scalar per group (lane-dense (G,128) output).
# -----------------------------------------------------------------------------
def _mbstd_kernel(x_ref, o_ref, *, eps, n_groups):
    for g in range(n_groups):
        xg = x_ref[g].astype(jnp.float32)                  # (G, D)
        mu = jnp.mean(xg, axis=0, keepdims=True)
        var = jnp.mean((xg - mu) ** 2, axis=0, keepdims=True)
        std = jnp.sqrt(var + eps)
        stat = jnp.mean(std)
        o_ref[g:g + 1, :] = jnp.full((1, o_ref.shape[-1]), stat, o_ref.dtype)


def minibatch_std_stat(x, c_real, group_size=5, eps=1e-8):
    """Per-sample minibatch-stddev statistic, shape (B,) float32."""
    B = x.shape[0]
    G = min(group_size, B)
    assert B % G == 0, "MiniBatch STDDEV: group size must divide batch size"
    n_groups = B // G
    xr = x[..., :c_real]                                   # drop padded lanes
    D = int(np.prod(xr.shape[1:]))
    xf = xr.reshape(B, D)
    if n_groups > 1:
        xg = xf.reshape(G, n_groups, D).transpose(1, 0, 2)
    else:
        xg = xf.reshape(1, G, D)
    stat_g = pl.pallas_call(
        functools.partial(_mbstd_kernel, eps=eps, n_groups=n_groups),
        out_shape=jax.ShapeDtypeStruct((n_groups, 128), jnp.float32),
    )(xg)[:, 0]                                            # (n_groups,)
    return jnp.tile(stat_g, G)                             # b -> group b % n_groups


# -----------------------------------------------------------------------------
# Final head: (flattened 4x4 conv) + bias + lrelu + final linear, one kernel.
# -----------------------------------------------------------------------------
def _head_kernel(x_ref, wc_ref, bc_ref, wl_ref, bl_ref, o_ref, *, slope):
    y = jnp.dot(x_ref[...], wc_ref[...], preferred_element_type=jnp.float32)
    y = y + bc_ref[...]
    y = jnp.where(y > 0, y, slope * y)
    o_ref[...] = (jnp.dot(y, wl_ref[...], preferred_element_type=jnp.float32)
                  + bl_ref[...])


def final_head(x_flat, wc, bc, wl, bl, *, slope=0.2):
    B = x_flat.shape[0]
    return pl.pallas_call(
        functools.partial(_head_kernel, slope=slope),
        out_shape=jax.ShapeDtypeStruct((B, 1), jnp.float32),
    )(x_flat.astype(jnp.bfloat16), wc, bc, wl, bl)


# -----------------------------------------------------------------------------
# Discriminator
# -----------------------------------------------------------------------------
class Discriminator:
    def __init__(self, in_size, img_channels=3, key=None):
        assert in_size <= 64, "IMG_SIZE is atmost 64 x 64"
        self.start_size = 4
        possible_channels = [32, 64, 128, 256, 512]
        num_blocks = int(np.log2(in_size / self.start_size)) + 1
        self.channels = possible_channels[:num_blocks]
        self.num_blocks = num_blocks
        self.kw = {
            "_padding": 1, "_stride": 1, "gain": 2 ** 0.5, "l-relu-slope": 0.2,
            "use-pn": True, "epsilon": 1e-8, "kernel-size": 3,
            "end-kernel-size": 4, "end-padding": 0,
            "downsample-kernel-size": 2, "downsample-stride": 2,
            "intermediate-units": 32, "use-one-conv-layer": True,
        }
        gain = self.kw["gain"]
        key = jax.random.PRNGKey(0) if key is None else key
        keys = iter(jax.random.split(key, 64))

        def conv_param(out_ch, in_ch, ksz):
            w = jax.random.normal(next(keys), (out_ch, in_ch, ksz, ksz),
                                  jnp.float32)
            b = jnp.zeros((out_ch,), jnp.float32)
            return w, b

        # fromRGB 1x1 convs (one per resolution) + discriminator conv blocks,
        # pre-packed to lane-padded bf16 (done once, not per forward call).
        self.rgb = []
        self.blocks = []
        for idx in range(num_blocks - 1):
            self.rgb.append(pack_conv(*conv_param(self.channels[idx],
                                                  img_channels, 1), gain=gain))
            self.blocks.append(
                pack_conv(*conv_param(self.channels[idx + 1],
                                      self.channels[idx], 3), gain=gain))
        self.rgb.append(pack_conv(*conv_param(self.channels[-1],
                                              img_channels, 1), gain=gain))

        # FinalDBlock: 3x3 conv on C+1 channels (minibatch-std channel folded
        # into a precomputed additive `border` term), 4x4 valid conv, linear.
        C = self.channels[-1]
        k = self.kw["kernel-size"]
        pad = self.kw["_padding"]
        S = self.start_size
        w1, b1 = conv_param(C, C + 1, k)
        fan1 = (C + 1) * k * k
        self.fconv1 = pack_conv(w1[:, :C], b1, gain=gain, fan_in=fan1)
        scale1 = gain / np.sqrt(fan1)
        w1s = jnp.transpose(w1[:, C], (1, 2, 0)) * scale1            # (k,k,C)
        Ho = S + 2 * pad - k + 1
        Wo = Ho
        Wrow = _round_up(S + 2 * pad, 8)
        mask = np.zeros((k, k, Ho, Wo), np.float32)
        for dh in range(k):
            for dw in range(k):
                hlo, hhi = max(0, pad - dh), min(Ho, S + pad - dh)
                wlo, whi = max(0, pad - dw), min(Wo, S + pad - dw)
                if hlo < hhi and wlo < whi:
                    mask[dh, dw, hlo:hhi, wlo:whi] = 1.0
        border = jnp.einsum("ijhw,ijc->hwc", jnp.asarray(mask), w1s)  # (Ho,Wo,C)
        Cp = _round_up(C, 128)
        bfull = jnp.zeros((Ho, Wrow, Cp), jnp.float32).at[:, :Wo, :C].set(border)
        self.border_flat = bfull.reshape(Ho * Wrow, Cp)

        k2 = self.kw["end-kernel-size"]
        w2, b2 = conv_param(C, C, k2)
        scale2 = gain / np.sqrt(C * k2 * k2)
        w2t = jnp.transpose(w2, (2, 3, 1, 0)) * scale2                # (k2,k2,C,C)
        w2p = jnp.zeros((k2, k2, Cp, Cp), jnp.float32).at[:, :, :C, :C].set(w2t)
        self.w2m = w2p.reshape(k2 * k2 * Cp, Cp).astype(jnp.bfloat16)
        self.b2p = jnp.zeros((1, Cp), jnp.float32).at[0, :C].set(b2)
        wl = jax.random.normal(next(keys), (1, C), jnp.float32)
        scalel = gain / np.sqrt(C)
        self.wlm = jnp.zeros((Cp, 1), jnp.float32).at[:C, 0].set(wl[0] * scalel)
        self.blm = jnp.zeros((1, 1), jnp.float32)
        self.c_final = C

    # --- layer helpers ------------------------------------------------------
    def _from_rgb(self, idx, x, *, pool=False, fade_old=None, alpha=1.0):
        # TODO(synk): fromRGB reconstructed as pure equalized conv + bias (no
        # activation); the fused pool/fade below rely on that linearity.
        wk, bp, k, _ = self.rgb[idx]
        return conv2d_fused(x, wk, bp, k=k, pad=0, act=False, pn=False,
                            pool=pool, fade_old=fade_old, alpha=alpha)

    def _disc_block(self, idx, x):
        # conv block (lrelu + pixel-norm) with fused 2x2 average pool
        wk, bp, k, c_real = self.blocks[idx]
        return conv2d_fused(x, wk, bp, k=k, pad=self.kw["_padding"],
                            act=True, slope=self.kw["l-relu-slope"],
                            pn=self.kw["use-pn"], c_real=c_real,
                            eps=self.kw["epsilon"], pool=True)

    def _final(self, x):
        # x: (B, 4, 4, Cpad) bf16 (real channels = self.c_final)
        B = x.shape[0]
        stat_b = minibatch_std_stat(x, self.c_final, group_size=5,
                                    eps=self.kw["epsilon"])          # (B,)
        stat_t = jnp.tile(stat_b.reshape(B, 1, 1), (1, 1, 128))      # (B,1,128)
        wk, bp, k, c_real = self.fconv1
        y = conv2d_fused(x, wk, bp, k=k, pad=self.kw["_padding"],
                         act=True, slope=self.kw["l-relu-slope"], pn=False,
                         c_real=c_real, stat=stat_t, border=self.border_flat)
        Cp = y.shape[-1]
        x_flat = y.reshape(B, self.start_size * self.start_size * Cp)
        return final_head(x_flat, self.w2m, self.b2p, self.wlm, self.blm,
                          slope=self.kw["l-relu-slope"])

    # --- forward ------------------------------------------------------------
    def __call__(self, img_nchw, alpha, steps):
        x = jnp.transpose(img_nchw, (0, 2, 3, 1))                    # -> NHWC
        nb = self.num_blocks
        if steps == 0:
            x = self._from_rgb(nb - 1, x)
        else:
            hi = self._from_rgb(nb - 1 - steps, x)        # rgb_layers[-(steps+1)]
            lo_new = self._disc_block(nb - 1 - steps, hi)  # disc_net[-steps] + pool
            # pool(fromRGB(img)) == fromRGB(pool(img)) (conv+bias is linear);
            # pool and the fade-in against lo_new are fused into this kernel.
            x = self._from_rgb(nb - steps, x, pool=True,
                               fade_old=lo_new, alpha=alpha)
            for idx in range(-steps + 1, 0):
                x = self._disc_block(len(self.blocks) + idx, x)      # conv + pool
        return self._final(x)


# -----------------------------------------------------------------------------
if __name__ == "__main__":
    root = jax.random.PRNGKey(0)
    param_key, img_key = jax.random.split(root)

    in_size = 16                 # -> channels [32, 64, 128], 2 disc blocks
    batch = 5                    # minibatch-std group size is 5
    steps = 2                    # full-resolution path with fade-in
    alpha = 0.5

    disc = Discriminator(in_size, img_channels=3, key=param_key)
    img = jax.random.normal(img_key, (batch, 3, in_size, in_size), jnp.float32)

    out = disc(img, alpha, steps)                    # (5, 1)
    out = jax.block_until_ready(out)
    assert out.shape == (batch, 1) and bool(jnp.all(jnp.isfinite(out)))
    print("KERNEL_OK")
</pallas_src>

<mosaic_0001>
module attributes {stable_mosaic.version = 11 : i64} {
  func.func @_conv_kernel(%arg0: i32, %arg1: memref<1x16x16x3xbf16, #tpu.memory_space<vmem>>, %arg2: memref<1x128x128xbf16, #tpu.memory_space<vmem>>, %arg3: memref<1x128xf32, #tpu.memory_space<vmem>>, %arg4: memref<1x16x16x128xbf16, #tpu.memory_space<vmem>>, %arg5: memref<17x16x128xbf16, #tpu.memory_space<vmem>>) attributes {dimension_semantics = [#tpu.dimension_semantics<parallel>], iteration_bounds = array<i64: 5>, scalar_prefetch = 0 : i64, scratch_operands = 1 : i64, tpu.core_type = #tpu.core_type<tc>, window_params = [{transform_indices = @transform_0, window_bounds = array<i64: 1, 16, 16, 3>}, {pipeline_mode = #tpu.pipeline_mode<synchronous>, transform_indices = @transform_1, window_bounds = array<i64: 1, 128, 128>}, {pipeline_mode = #tpu.pipeline_mode<synchronous>, transform_indices = @transform_2, window_bounds = array<i64: 1, 128>}, {transform_indices = @transform_3, window_bounds = array<i64: 1, 16, 16, 128>}]} {
    %cst = arith.constant 0.000000e+00 : bf16
    %0 = vector.broadcast %cst : bf16 to vector<17x16x128xbf16>
    %c0 = arith.constant 0 : index
    %c0_0 = arith.constant 0 : index
    %c0_1 = arith.constant 0 : index
    %1 = vector.load %arg5[%c0, %c0_0, %c0_1] : memref<17x16x128xbf16, #tpu.memory_space<vmem>>, vector<17x16x128xbf16>
    tpu.vector_store %arg5[%c0, %c0_0, %c0_1], %0 {strides = array<i32>} : memref<17x16x128xbf16, #tpu.memory_space<vmem>>, vector<17x16x128xbf16>,
    %c0_2 = arith.constant 0 : index
    %c0_3 = arith.constant 0 : index
    %c0_4 = arith.constant 0 : index
    %c0_5 = arith.constant 0 : index
    %2 = vector.load %arg1[%c0_2, %c0_3, %c0_4, %c0_5] : memref<1x16x16x3xbf16, #tpu.memory_space<vmem>>, vector<1x16x16x3xbf16>
    %3 = vector.shape_cast %2 : vector<1x16x16x3xbf16> to vector<16x16x3xbf16>
    %c0_6 = arith.constant 0 : index
    %c0_7 = arith.constant 0 : index
    %c0_8 = arith.constant 0 : index
    %4 = vector.load %arg5[%c0_6, %c0_7, %c0_8] : memref<17x16x128xbf16, #tpu.memory_space<vmem>>, vector<16x16x3xbf16>
    tpu.vector_store %arg5[%c0_6, %c0_7, %c0_8], %3 {strides = array<i32>} : memref<17x16x128xbf16, #tpu.memory_space<vmem>>, vector<16x16x3xbf16>,
    %c0_9 = arith.constant 0 : index
    %c0_10 = arith.constant 0 : index
    %c0_11 = arith.constant 0 : index
    %5 = vector.load %arg5[%c0_9, %c0_10, %c0_11] : memref<17x16x128xbf16, #tpu.memory_space<vmem>>, vector<17x16x128xbf16>
    %6 = vector.shape_cast %5 : vector<17x16x128xbf16> to vector<272x128xbf16>
    %7 = vector.extract_strided_slice %6 {offsets = [0, 0], sizes = [256, 128], strides = [1, 1]} : vector<272x128xbf16> to vector<256x128xbf16>
    %c0_12 = arith.constant 0 : index
    %c0_13 = arith.constant 0 : index
    %c0_14 = arith.constant 0 : index
    %8 = vector.load %arg2[%c0_12, %c0_13, %c0_14] : memref<1x128x128xbf16, #tpu.memory_space<vmem>>, vector<1x128x128xbf16>
    %9 = vector.shape_cast %8 : vector<1x128x128xbf16> to vector<128x128xbf16>
    %cst_15 = arith.constant dense<0.000000e+00> : vector<256x128xf32>
    %10 = tpu.matmul %7, %9, %cst_15 {dimension_numbers = #tpu.dot_dimension_numbers<[1], [0], [0], [1], [0, 0, 1, 1], [], []>} : vector<256x128xbf16>, vector<128x128xbf16>, vector<256x128xf32> -> vector<256x128xf32>
    %c0_16 = arith.constant 0 : index
    %c0_17 = arith.constant 0 : index
    %11 = vector.load %arg3[%c0_16, %c0_17] : memref<1x128xf32, #tpu.memory_space<vmem>>, vector<1x128xf32>
    %12 = vector.broadcast %11 : vector<1x128xf32> to vector<256x128xf32>
    %13 = arith.addf %10, %12 : vector<256x128xf32>
    %14 = vector.shape_cast %13 : vector<256x128xf32> to vector<16x16x128xf32>
    %15 = arith.truncf %14 : vector<16x16x128xf32> to vector<16x16x128xbf16>
    %c0_18 = arith.constant 0 : index
    %c0_19 = arith.constant 0 : index
    %c0_20 = arith.constant 0 : index
    %c0_21 = arith.constant 0 : index
    %16 = vector.load %arg4[%c0_18, %c0_19, %c0_20, %c0_21] : memref<1x16x16x128xbf16, #tpu.memory_space<vmem>>, vector<1x16x16x128xbf16>
    %17 = vector.shape_cast %16 : vector<1x16x16x128xbf16> to vector<16x16x128xbf16>
    %18 = vector.shape_cast %15 : vector<16x16x128xbf16> to vector<1x16x16x128xbf16>
    tpu.vector_store %arg4[%c0_18, %c0_19, %c0_20, %c0_21], %18 {strides = array<i32>} : memref<1x16x16x128xbf16, #tpu.memory_space<vmem>>, vector<1x16x16x128xbf16>,
    return
  }
  func.func @transform_0(%arg0: i32) -> (i32, i32, i32, i32) {
    %c0_i32 = arith.constant 0 : i32
    %c0_i32_0 = arith.constant 0 : i32
    %c0_i32_1 = arith.constant 0 : i32
    %c0_i32_2 = arith.constant 0 : i32
    return %arg0, %c0_i32, %c0_i32_0, %c0_i32_1 : i32, i32, i32, i32
  }
  func.func @transform_1(%arg0: i32) -> (i32, i32, i32) {
    %c0_i32 = arith.constant 0 : i32
    %c0_i32_0 = arith.constant 0 : i32
    %c0_i32_1 = arith.constant 0 : i32
    %c0_i32_2 = arith.constant 0 : i32
    return %c0_i32, %c0_i32_0, %c0_i32_1 : i32, i32, i32
  }
  func.func @transform_2(%arg0: i32) -> (i32, i32) {
    %c0_i32 = arith.constant 0 : i32
    %c0_i32_0 = arith.constant 0 : i32
    %c0_i32_1 = arith.constant 0 : i32
    return %c0_i32, %c0_i32_0 : i32, i32
  }
  func.func @transform_3(%arg0: i32) -> (i32, i32, i32, i32) {
    %c0_i32 = arith.constant 0 : i32
    %c0_i32_0 = arith.constant 0 : i32
    %c0_i32_1 = arith.constant 0 : i32
    %c0_i32_2 = arith.constant 0 : i32
    return %arg0, %c0_i32, %c0_i32_0, %c0_i32_1 : i32, i32, i32, i32
  }
}

</mosaic_0001>

<llo_original>
// kernel: tpu_custom_call.1
$region0: #{tpu_custom_call.1}
  #allocation0 [shape = 'u32[]', space=smem, size = 0x4, offset = 0x4, fixed_abs, tag = 'smem constant byte address 0x4 - core index']
  #allocation1 [shape = 'u32[144,128]{1,0:T(1,128)}', space=vmem, size = 0x12000, scoped, tag = 'internal scratch']
  #allocation2 [shape = 'bf16[17,16,128]{2,1,0:T(16,128)(2,1)}', space=vmem, size = 0x11000, scoped, tag = 'scratch operand']
  %s0 = inlined_call_operand.vmem [shape: bf16[5,16,16,3], index: 0, kind: input, shape index: {}]
  %s1 = inlined_call_operand.vmem [shape: bf16[1,128,128], index: 1, kind: input, shape index: {}]
  %s2 = inlined_call_operand.vmem [shape: f32[1,128], index: 2, kind: input, shape index: {}]
  %s3 = inlined_call_operand.hbm [shape: bf16[5,16,16,128], index: 3, kind: output, shape index: {}]
  %s4 = sld [smem:[#allocation0]]
  $region45: #{tpu_custom_call.1} parent=0
    _
  %s6 = ssub.s32 1, %s4
  %s7 = scalar_select 0, %s6, %s4
  $region1: #{tpu_custom_call.1} parent=0
    #allocation3 [shape = 'u8[131072]{0}', space=vmem, size = 0x20000, scoped, tag = 'output window, operand 0']
    #allocation4 [shape = 's32[2]{0}', space=sflag, size = 0x8, scoped, tag = 'scoped memory for tpu_custom_call.1']
    %8 = vsyncpa [#allocation4], 0
    %s9 = scalar_lea.sflag [#allocation4], 1
    %10 = vsyncpa %s9, 0
    loop: start=0, step=1, limit=7
    $region2: #{tpu_custom_call.1} parent=1 // loop_pre_header
      _
    $region3: #{tpu_custom_call.1} parent=1 // loop_header
      %s12 = sphi 0, %s16
      %p13 = scmp.ge.s32.totalorder %s12, 7
      %s22 = sphi 0, %s24
      %s25 = sphi 0, %s22
      %s26 = sphi 0, %s25
      %s42 = sphi 0, %s26
      %s46 = sphi 0, %s46
      %s48 = sphi 0, %s46
      %s49 = sphi 0, %s48
      %s63 = sphi 0, %s49
      %s67 = sphi 0, %s67
      %s69 = sphi 0, %s67
      %s70 = sphi 0, %s69
      %s84 = sphi 0, %s70
      %s90 = sphi 0, %s92
      %s93 = sphi 0, %s90
      %s94 = sphi 0, %s93
      %s110 = sphi 0, %s94
    $region4: #{tpu_custom_call.1} parent=1 // loop_header_branch
      %15 = sbr.rel (%p13) target = $region8
    $region5: #{tpu_custom_call.1} parent=1 // loop_body
      %s17 = ssub.s32 %s12, 1
      %s18 = ssub.s32 %s12, 2
      %s19 = sadd.s32 %s12, 1
      %s20 = ssub.s32 %s12, %s19
      %p21 = scmp.eq.s32.totalorder %s20, 0
      %s23 = sadd.s32 %s22, 1
      %s24 = scalar_select %p21, %s22, %s23
      %p27 = pneg %p21
      %p28 = scmp.eq.s32.totalorder %s12, 4
      %p29 = por %p27, %p28
      %p30 = scmp.ne.s32.totalorder %s22, %s25
      %p31 = scmp.eq.s32.totalorder %s12, 0
      %p32 = por %p30, %p31
      %p33 = scmp.ne.s32.totalorder %s22, %s25
      %p34 = scmp.eq.s32.totalorder %s17, 4
      %p35 = por %p33, %p34
      %p36 = scmp.ne.s32.totalorder %s25, %s26
      %p37 = scmp.eq.s32.totalorder %s17, 0
      %p38 = por %p36, %p37
      %p39 = scmp.ne.s32.totalorder %s25, %s26
      %p40 = scmp.eq.s32.totalorder %s18, 4
      %p41 = por %p39, %p40
      %p43 = scmp.ne.s32.totalorder %s26, %s42
      %p44 = scmp.eq.s32.totalorder %s18, 0
      %p45 = por %p43, %p44
      %s47 = sadd.s32 %s46, 1
      %p50 = scmp.eq.s32.totalorder %s12, 4
      %p51 = scmp.ne.s32.totalorder %s46, %s48
      %p52 = scmp.eq.s32.totalorder %s12, 0
      %p53 = por %p51, %p52
      %p54 = scmp.ne.s32.totalorder %s46, %s48
      %p55 = scmp.eq.s32.totalorder %s17, 4
      %p56 = por %p54, %p55
      %p57 = scmp.ne.s32.totalorder %s48, %s49
      %p58 = scmp.eq.s32.totalorder %s17, 0
      %p59 = por %p57, %p58
      %p60 = scmp.ne.s32.totalorder %s48, %s49
      %p61 = scmp.eq.s32.totalorder %s18, 4
      %p62 = por %p60, %p61
      %p64 = scmp.ne.s32.totalorder %s49, %s63
      %p65 = scmp.eq.s32.totalorder %s18, 0
      %p66 = por %p64, %p65
      %s68 = sadd.s32 %s67, 1
      %p71 = scmp.eq.s32.totalorder %s12, 4
      %p72 = scmp.ne.s32.totalorder %s67, %s69
      %p73 = scmp.eq.s32.totalorder %s12, 0
      %p74 = por %p72, %p73
      %p75 = scmp.ne.s32.totalorder %s67, %s69
      %p76 = scmp.eq.s32.totalorder %s17, 4
      %p77 = por %p75, %p76
      %p78 = scmp.ne.s32.totalorder %s69, %s70
      %p79 = scmp.eq.s32.totalorder %s17, 0
      %p80 = por %p78, %p79
      %p81 = scmp.ne.s32.totalorder %s69, %s70
      %p82 = scmp.eq.s32.totalorder %s18, 4
      %p83 = por %p81, %p82
      %p85 = scmp.ne.s32.totalorder %s70, %s84
      %p86 = scmp.eq.s32.totalorder %s18, 0
      %p87 = por %p85, %p86
      %s88 = ssub.s32 %s12, %s19
      %p89 = scmp.eq.s32.totalorder %s88, 0
      %s91 = sadd.s32 %s90, 1
      %s92 = scalar_select %p89, %s90, %s91
      %p95 = pneg %p89
      %p96 = scmp.eq.s32.totalorder %s12, 4
      %p97 = por %p95, %p96
      %p98 = scmp.ne.s32.totalorder %s90, %s93
      %p99 = scmp.eq.s32.totalorder %s12, 0
      %p100 = por %p98, %p99
      %p101 = scmp.ne.s32.totalorder %s90, %s93
      %p102 = scmp.eq.s32.totalorder %s17, 4
      %p103 = por %p101, %p102
      %p104 = scmp.ne.s32.totalorder %s93, %s94
      %p105 = scmp.eq.s32.totalorder %s17, 0
      %p106 = por %p104, %p105
      %p107 = scmp.ne.s32.totalorder %s93, %s94
      %p108 = scmp.eq.s32.totalorder %s18, 4
      %p109 = por %p107, %p108
      %p111 = scmp.ne.s32.totalorder %s94, %s110
      %p112 = scmp.eq.s32.totalorder %s18, 0
      %p113 = por %p111, %p112
      %p114 = scmp.le.s32.totalorder 1, %s12
      %p115 = scmp.lt.s32.totalorder %s12, 6
      %p116 = pnand %p114, %p115
      %p117 = pneg %p116
      // Predicated region
      $region9: #{tpu_custom_call.1} parent=5 // pred_check
        _
      $region10: #{tpu_custom_call.1} parent=5 // pred_check_branch
        %119 = sbr.rel (%p116) target = $region12
      $region11: #{tpu_custom_call.1} parent=5 // pred_region
        %s120 = ssub.s32 %s12, 1
        // Predicated region
        $region13: #{tpu_custom_call.1} parent=11 // pred_check
          %p121 = pneg %p59
        $region14: #{tpu_custom_call.1} parent=11 // pred_check_branch
          %123 = sbr.rel (%p121) target = $region16
        $region15: #{tpu_custom_call.1} parent=11 // pred_region
          _
        $region16: #{tpu_custom_call.1} parent=11 // pred_fallthru
          _
        // Predicated region
        $region17: #{tpu_custom_call.1} parent=11 // pred_check
          %p124 = pneg %p80
        $region18: #{tpu_custom_call.1} parent=11 // pred_check_branch
          %126 = sbr.rel (%p124) target = $region20
        $region19: #{tpu_custom_call.1} parent=11 // pred_region
          _
        $region20: #{tpu_custom_call.1} parent=11 // pred_fallthru
          _
      $region12: #{tpu_custom_call.1} parent=5 // pred_fallthru
        _
      %p127 = scmp.lt.s32.totalorder %s12, 5
      // Predicated region
      $region21: #{tpu_custom_call.1} parent=5 // pred_check
        %p128 = pneg %p127
      $region22: #{tpu_custom_call.1} parent=5 // pred_check_branch
        %130 = sbr.rel (%p128) target = $region24
      $region23: #{tpu_custom_call.1} parent=5 // pred_region
        // Predicated region
        $region25: #{tpu_custom_call.1} parent=23 // pred_check
          %p131 = pneg %p32
        $region26: #{tpu_custom_call.1} parent=23 // pred_check_branch
          %133 = sbr.rel (%p131) target = $region28
        $region27: #{tpu_custom_call.1} parent=23 // pred_region
          %p134 = scmp.lt.s32.totalorder %s12, 4
          %s135 = scalar_select %p134, %s12, 4
          %s136 = smul.addr %s135, 32
          %s137 = smul.addr %s136, 4
          %s138 = scalar_lea.vmem %s0, %s137
        $region28: #{tpu_custom_call.1} parent=23 // pred_fallthru
          _
      $region24: #{tpu_custom_call.1} parent=5 // pred_fallthru
        _
      %p139 = scmp.le.s32.totalorder 1, %s12
      %p140 = scmp.lt.s32.totalorder %s12, 6
      %p141 = pnand %p139, %p140
      %p142 = pneg %p141
      // Predicated region
      $region29: #{tpu_custom_call.1} parent=5 // pred_check
        _
      $region30: #{tpu_custom_call.1} parent=5 // pred_check_branch
        %144 = sbr.rel (%p141) target = $region32
      $region31: #{tpu_custom_call.1} parent=5 // pred_region
        %s145 = ssub.s32 %s12, 1
        %p146 = scmp.lt.s32.totalorder %s17, 4
        %s147 = scalar_select %p146, %s17, 4
        %s148 = smul.addr %s147, 32
        %s149 = smul.addr %s148, 4
        %s150 = scalar_lea.vmem %s0, %s149
        %p151 = pneg %p38
        %p152 = pneg %p35
        %p153 = pneg %p59
        %p154 = pneg %p56
        %p155 = pneg %p80
        %p156 = pneg %p77
        %p157 = pneg %p106
        %p158 = pneg %p103
        %s159 = sand.u32 %s93, 1
        %s160 = scalar_lea.sflag [#allocation4], %s159
        %s161 = sand.u32 %s93, 1
        %s162 = smul.addr %s161, 128
        %s163 = scalar_lea.vmem [#allocation3], %s162
        %p164 = scmp.lt.s32.totalorder %s17, 4
        %s165 = scalar_select %p164, %s17, 4
        %s166 = smul.addr %s165, 32
        %s167 = smul.addr %s166, 4
        %s168 = scalar_lea.vmem %s0, %s167
        %170 = vst [vmem:[#allocation2] sm:$0xff] 0
        %171 = vst [vmem:[#allocation2 + $0x8] sm:$0xff] 0
        %172 = vst [vmem:[#allocation2 + $0x10] sm:$0xff] 0
        %173 = vst [vmem:[#allocation2 + $0x18] sm:$0xff] 0
        %174 = vst [vmem:[#allocation2 + $0x20] sm:$0xff] 0
        %175 = vst [vmem:[#allocation2 + $0x28] sm:$0xff] 0
        %176 = vst [vmem:[#allocation2 + $0x30] sm:$0xff] 0
        %177 = vst [vmem:[#allocation2 + $0x38] sm:$0xff] 0
        %178 = vst [vmem:[#allocation2 + $0x40] sm:$0xff] 0
        %179 = vst [vmem:[#allocation2 + $0x48] sm:$0xff] 0
        %180 = vst [vmem:[#allocation2 + $0x50] sm:$0xff] 0
        %181 = vst [vmem:[#allocation2 + $0x58] sm:$0xff] 0
        %182 = vst [vmem:[#allocation2 + $0x60] sm:$0xff] 0
        %183 = vst [vmem:[#allocation2 + $0x68] sm:$0xff] 0
        %184 = vst [vmem:[#allocation2 + $0x70] sm:$0xff] 0
        %185 = vst [vmem:[#allocation2 + $0x78] sm:$0xff] 0
        %186 = vst [vmem:[#allocation2 + $0x80] sm:$0xff] 0
        %v187 = vld [vmem:[%s168] sm:$0xf]
        %v188 = vld [vmem:[%s168 + $0x4] sm:$0xf]
        %v189 = vld [vmem:[%s168 + $0x8] sm:$0xf]
        %v190 = vld [vmem:[%s168 + $0xc] sm:$0xf]
        %v191 = vld [vmem:[%s168 + $0x10] sm:$0xf]
        %v192 = vld [vmem:[%s168 + $0x14] sm:$0xf]
        %v193 = vld [vmem:[%s168 + $0x18] sm:$0xf]
        %v194 = vld [vmem:[%s168 + $0x1c] sm:$0xf]
        %v195 = vld [vmem:[%s168 + $0x20] sm:$0xf]
        %v196 = vld [vmem:[%s168 + $0x24] sm:$0xf]
        %v197 = vld [vmem:[%s168 + $0x28] sm:$0xf]
        %v198 = vld [vmem:[%s168 + $0x2c] sm:$0xf]
        %v199 = vld [vmem:[%s168 + $0x30] sm:$0xf]
        %v200 = vld [vmem:[%s168 + $0x34] sm:$0xf]
        %v201 = vld [vmem:[%s168 + $0x38] sm:$0xf]
        %v202 = vld [vmem:[%s168 + $0x3c] sm:$0xf]
        %v203 = vld [vmem:[%s168 + $0x40] sm:$0xf]
        %v204 = vld [vmem:[%s168 + $0x44] sm:$0xf]
        %v205 = vld [vmem:[%s168 + $0x48] sm:$0xf]
        %v206 = vld [vmem:[%s168 + $0x4c] sm:$0xf]
        %v207 = vld [vmem:[%s168 + $0x50] sm:$0xf]
        %v208 = vld [vmem:[%s168 + $0x54] sm:$0xf]
        %v209 = vld [vmem:[%s168 + $0x58] sm:$0xf]
        %v210 = vld [vmem:[%s168 + $0x5c] sm:$0xf]
        %v211 = vld [vmem:[%s168 + $0x60] sm:$0xf]
        %v212 = vld [vmem:[%s168 + $0x64] sm:$0xf]
        %v213 = vld [vmem:[%s168 + $0x68] sm:$0xf]
        %v214 = vld [vmem:[%s168 + $0x6c] sm:$0xf]
        %v215 = vld [vmem:[%s168 + $0x70] sm:$0xf]
        %v216 = vld [vmem:[%s168 + $0x74] sm:$0xf]
        %v217 = vld [vmem:[%s168 + $0x78] sm:$0xf]
        %v218 = vld [vmem:[%s168 + $0x7c] sm:$0xf]
        %v251 = vunpack.c.l.b16 %v187
        %v252 = vunpack.c.l.b16 %v188
        %v253 = vunpack.c.l.b16 %v189
        %v254 = vunpack.c.l.b16 %v190
        %v255 = vunpack.c.l.b16 %v191
        %v256 = vunpack.c.l.b16 %v192
        %v257 = vunpack.c.l.b16 %v193
        %v258 = vunpack.c.l.b16 %v194
        %v259 = vunpack.c.l.b16 %v195
        %v260 = vunpack.c.l.b16 %v196
        %v261 = vunpack.c.l.b16 %v197
        %v262 = vunpack.c.l.b16 %v198
        %v263 = vunpack.c.l.b16 %v199
        %v264 = vunpack.c.l.b16 %v200
        %v265 = vunpack.c.l.b16 %v201
        %v266 = vunpack.c.l.b16 %v202
        %v267 = vunpack.c.l.b16 %v203
        %v268 = vunpack.c.l.b16 %v204
        %v269 = vunpack.c.l.b16 %v205
        %v270 = vunpack.c.l.b16 %v206
        %v271 = vunpack.c.l.b16 %v207
        %v272 = vunpack.c.l.b16 %v208
        %v273 = vunpack.c.l.b16 %v209
        %v274 = vunpack.c.l.b16 %v210
        %v275 = vunpack.c.l.b16 %v211
        %v276 = vunpack.c.l.b16 %v212
        %v277 = vunpack.c.l.b16 %v213
        %v278 = vunpack.c.l.b16 %v214
        %v279 = vunpack.c.l.b16 %v215
        %v280 = vunpack.c.l.b16 %v216
        %v281 = vunpack.c.l.b16 %v217
        %v282 = vunpack.c.l.b16 %v218
        %v283 = vpack.c.b16 %v252, %v251
        %v284 = vpack.c.b16 %v254, %v253
        %v285 = vpack.c.b16 %v256, %v255
        %v286 = vpack.c.b16 %v258, %v257
        %v287 = vpack.c.b16 %v260, %v259
        %v288 = vpack.c.b16 %v262, %v261
        %v289 = vpack.c.b16 %v264, %v263
        %v290 = vpack.c.b16 %v266, %v265
        %v291 = vpack.c.b16 %v268, %v267
        %v292 = vpack.c.b16 %v270, %v269
        %v293 = vpack.c.b16 %v272, %v271
        %v294 = vpack.c.b16 %v274, %v273
        %v295 = vpack.c.b16 %v276, %v275
        %v296 = vpack.c.b16 %v278, %v277
        %v297 = vpack.c.b16 %v280, %v279
        %v298 = vpack.c.b16 %v282, %v281
        %vm315 = vcmask 23552
        %316 = vst.msk [vmem:[#allocation2] sm:$0xff] %vm315, %v283
        %317 = vst.msk [vmem:[#allocation2 + $0x8] sm:$0xff] %vm315, %v284
        %318 = vst.msk [vmem:[#allocation2 + $0x10] sm:$0xff] %vm315, %v285
        %319 = vst.msk [vmem:[#allocation2 + $0x18] sm:$0xff] %vm315, %v286
        %320 = vst.msk [vmem:[#allocation2 + $0x20] sm:$0xff] %vm315, %v287
        %321 = vst.msk [vmem:[#allocation2 + $0x28] sm:$0xff] %vm315, %v288
        %322 = vst.msk [vmem:[#allocation2 + $0x30] sm:$0xff] %vm315, %v289
        %323 = vst.msk [vmem:[#allocation2 + $0x38] sm:$0xff] %vm315, %v290
        %324 = vst.msk [vmem:[#allocation2 + $0x40] sm:$0xff] %vm315, %v291
        %325 = vst.msk [vmem:[#allocation2 + $0x48] sm:$0xff] %vm315, %v292
        %326 = vst.msk [vmem:[#allocation2 + $0x50] sm:$0xff] %vm315, %v293
        %327 = vst.msk [vmem:[#allocation2 + $0x58] sm:$0xff] %vm315, %v294
        %328 = vst.msk [vmem:[#allocation2 + $0x60] sm:$0xff] %vm315, %v295
        %329 = vst.msk [vmem:[#allocation2 + $0x68] sm:$0xff] %vm315, %v296
        %330 = vst.msk [vmem:[#allocation2 + $0x70] sm:$0xff] %vm315, %v297
        %331 = vst.msk [vmem:[#allocation2 + $0x78] sm:$0xff] %vm315, %v298
        %v332 = vld [vmem:[#allocation2] sm:$0xff]
        %v333 = vld [vmem:[#allocation2 + $0x8] sm:$0xff]
        %v334 = vld [vmem:[#allocation2 + $0x10] sm:$0xff]
        %v335 = vld [vmem:[#allocation2 + $0x18] sm:$0xff]
        %v336 = vld [vmem:[#allocation2 + $0x20] sm:$0xff]
        %v337 = vld [vmem:[#allocation2 + $0x28] sm:$0xff]
        %v338 = vld [vmem:[#allocation2 + $0x30] sm:$0xff]
        %v339 = vld [vmem:[#allocation2 + $0x38] sm:$0xff]
        %v340 = vld [vmem:[#allocation2 + $0x40] sm:$0xff]
        %v341 = vld [vmem:[#allocation2 + $0x48] sm:$0xff]
        %v342 = vld [vmem:[#allocation2 + $0x50] sm:$0xff]
        %v343 = vld [vmem:[#allocation2 + $0x58] sm:$0xff]
        %v344 = vld [vmem:[#allocation2 + $0x60] sm:$0xff]
        %v345 = vld [vmem:[#allocation2 + $0x68] sm:$0xff]
        %v346 = vld [vmem:[#allocation2 + $0x70] sm:$0xff]
        %v347 = vld [vmem:[#allocation2 + $0x78] sm:$0xff]
        %v348 = vld [vmem:[%s1] sm:$0xf]
        %v349 = vld [vmem:[%s1 + $0x4] sm:$0xf]
        %v350 = vld [vmem:[%s1 + $0x8] sm:$0xf]
        %v351 = vld [vmem:[%s1 + $0xc] sm:$0xf]
        %v352 = vld [vmem:[%s1 + $0x10] sm:$0xf]
        %v353 = vld [vmem:[%s1 + $0x14] sm:$0xf]
        %v354 = vld [vmem:[%s1 + $0x18] sm:$0xf]
        %v355 = vld [vmem:[%s1 + $0x1c] sm:$0xf]
        %v356 = vld [vmem:[%s1 + $0x20] sm:$0xf]
        %v357 = vld [vmem:[%s1 + $0x24] sm:$0xf]
        %v358 = vld [vmem:[%s1 + $0x28] sm:$0xf]
        %v359 = vld [vmem:[%s1 + $0x2c] sm:$0xf]
        %v360 = vld [vmem:[%s1 + $0x30] sm:$0xf]
        %v361 = vld [vmem:[%s1 + $0x34] sm:$0xf]
        %v362 = vld [vmem:[%s1 + $0x38] sm:$0xf]
        %v363 = vld [vmem:[%s1 + $0x3c] sm:$0xf]
        %v364 = vld [vmem:[%s2] sm:$0x1]
        %v366 = vlaneseq
        %v367 = vshrl.u32 %v366, 7
        %v368 = vsub.s32 0, %v367
        %v369 = vrot.slane %v364, %v368
        %v387 = vunpack.c.l.b16 %v348
        %v388 = vunpack.c.l.b16 %v349
        %v389 = vunpack.c.l.b16 %v350
        %v390 = vunpack.c.l.b16 %v351
        %v391 = vunpack.c.l.b16 %v352
        %v392 = vunpack.c.l.b16 %v353
        %v393 = vunpack.c.l.b16 %v354
        %v394 = vunpack.c.l.b16 %v355
        %v395 = vunpack.c.l.b16 %v356
        %v396 = vunpack.c.l.b16 %v357
        %v397 = vunpack.c.l.b16 %v358
        %v398 = vunpack.c.l.b16 %v359
        %v399 = vunpack.c.l.b16 %v360
        %v400 = vunpack.c.l.b16 %v361
        %v401 = vunpack.c.l.b16 %v362
        %v402 = vunpack.c.l.b16 %v363
        %v403 = vpack.c.b16 %v388, %v387
        %v404 = vpack.c.b16 %v390, %v389
        %v405 = vpack.c.b16 %v392, %v391
        %v406 = vpack.c.b16 %v394, %v393
        %v407 = vpack.c.b16 %v396, %v395
        %v408 = vpack.c.b16 %v398, %v397
        %v409 = vpack.c.b16 %v400, %v399
        %v410 = vpack.c.b16 %v402, %v401
        %419 = vmatprep.subr.bf16.mxu0 0
        %420 = vmatpush1.bf16.msra.mxu0 %v403
        %421 = vmatprep.subr.bf16.mxu0 0
        %422 = vmatpush1.bf16.msra.mxu0 %v404
        %423 = vmatprep.subr.bf16.mxu0 0
        %424 = vmatpush1.bf16.msra.mxu0 %v405
        %425 = vmatprep.subr.bf16.mxu0 0
        %426 = vmatpush1.bf16.msra.mxu0 %v406
        %427 = vmatprep.subr.bf16.mxu0 0
        %428 = vmatpush1.bf16.msra.mxu0 %v407
        %429 = vmatprep.subr.bf16.mxu0 0
        %430 = vmatpush1.bf16.msra.mxu0 %v408
        %431 = vmatprep.subr.bf16.mxu0 0
        %432 = vmatpush1.bf16.msra.mxu0 %v409
        %433 = vmatprep.subr.bf16.mxu0 0
        %434 = vmatpush1.bf16.msra.mxu0 %v410
        %435 = vmatprep.subr.bf16.mxu0 0
        %436 = vmatpush1.bf16.msra.mxu0 0
        %437 = vmatprep.subr.bf16.mxu0 0
        %438 = vmatpush1.bf16.msra.mxu0 0
        %439 = vmatprep.subr.bf16.mxu0 0
        %440 = vmatpush1.bf16.msra.mxu0 0
        %441 = vmatprep.subr.bf16.mxu0 0
        %442 = vmatpush1.bf16.msra.mxu0 0
        %443 = vmatprep.subr.bf16.mxu0 0
        %444 = vmatpush1.bf16.msra.mxu0 0
        %445 = vmatprep.subr.bf16.mxu0 0
        %446 = vmatpush1.bf16.msra.mxu0 0
        %447 = vmatprep.subr.bf16.mxu0 0
        %448 = vmatpush1.bf16.msra.mxu0 0
        %449 = vmatprep.subr.bf16.mxu0 0
        %450 = vmatpush1.bf16.msra.mxu0 0
        %451 = vmatprep.mubr.bf16.mxu0 0
        %452 = vmatmul.mubr.bf16.gmra.mrb[0].mxu0 %v332
        %v453 = vpop.f32.mrb[0].mxu0
        %v454 = vadd.f32 %v369, %v453
        %v455 = vpop.f32.mrb[0].mxu0
        %v456 = vpop.f32.mrb[0].mxu0
        %v457 = vadd.f32 %v369, %v456
        %v458 = vpop.f32.mrb[0].mxu0
        %459 = vmatprep.mubr.bf16.mxu0 0
        %460 = vmatmul.mubr.bf16.gmra.mrb[0].mxu0 %v333
        %v461 = vpop.f32.mrb[0].mxu0
        %v462 = vadd.f32 %v369, %v461
        %v463 = vpop.f32.mrb[0].mxu0
        %v464 = vpop.f32.mrb[0].mxu0
        %v465 = vadd.f32 %v369, %v464
        %v466 = vpop.f32.mrb[0].mxu0
        %467 = vmatprep.mubr.bf16.mxu0 0
        %468 = vmatmul.mubr.bf16.gmra.mrb[0].mxu0 %v334
        %v469 = vpop.f32.mrb[0].mxu0
        %v470 = vadd.f32 %v369, %v469
        %v471 = vpop.f32.mrb[0].mxu0
        %v472 = vpop.f32.mrb[0].mxu0
        %v473 = vadd.f32 %v369, %v472
        %v474 = vpop.f32.mrb[0].mxu0
        %475 = vmatprep.mubr.bf16.mxu0 0
        %476 = vmatmul.mubr.bf16.gmra.mrb[0].mxu0 %v335
        %v477 = vpop.f32.mrb[0].mxu0
        %v478 = vadd.f32 %v369, %v477
        %v479 = vpop.f32.mrb[0].mxu0
        %v480 = vpop.f32.mrb[0].mxu0
        %v481 = vadd.f32 %v369, %v480
        %v482 = vpop.f32.mrb[0].mxu0
        %483 = vmatprep.mubr.bf16.mxu0 0
        %484 = vmatmul.mubr.bf16.gmra.mrb[0].mxu0 %v336
        %v485 = vpop.f32.mrb[0].mxu0
        %v486 = vadd.f32 %v369, %v485
        %v487 = vpop.f32.mrb[0].mxu0
        %v488 = vpop.f32.mrb[0].mxu0
        %v489 = vadd.f32 %v369, %v488
        %v490 = vpop.f32.mrb[0].mxu0
        %491 = vmatprep.mubr.bf16.mxu0 0
        %492 = vmatmul.mubr.bf16.gmra.mrb[0].mxu0 %v337
        %v493 = vpop.f32.mrb[0].mxu0
        %v494 = vadd.f32 %v369, %v493
        %v495 = vpop.f32.mrb[0].mxu0
        %v496 = vpop.f32.mrb[0].mxu0
        %v497 = vadd.f32 %v369, %v496
        %v498 = vpop.f32.mrb[0].mxu0
        %499 = vmatprep.mubr.bf16.mxu0 0
        %500 = vmatmul.mubr.bf16.gmra.mrb[0].mxu0 %v338
        %v501 = vpop.f32.mrb[0].mxu0
        %v502 = vadd.f32 %v369, %v501
        %v503 = vpop.f32.mrb[0].mxu0
        %v504 = vpop.f32.mrb[0].mxu0
        %v505 = vadd.f32 %v369, %v504
        %v506 = vpop.f32.mrb[0].mxu0
        %507 = vmatprep.mubr.bf16.mxu0 0
        %508 = vmatmul.mubr.bf16.gmra.mrb[0].mxu0 %v339
        %v509 = vpop.f32.mrb[0].mxu0
        %v510 = vadd.f32 %v369, %v509
        %v511 = vpop.f32.mrb[0].mxu0
        %v512 = vpop.f32.mrb[0].mxu0
        %v513 = vadd.f32 %v369, %v512
        %v514 = vpop.f32.mrb[0].mxu0
        %515 = vmatprep.mubr.bf16.mxu0 0
        %516 = vmatmul.mubr.bf16.gmra.mrb[0].mxu0 %v340
        %v517 = vpop.f32.mrb[0].mxu0
        %v518 = vadd.f32 %v369, %v517
        %v519 = vpop.f32.mrb[0].mxu0
        %v520 = vpop.f32.mrb[0].mxu0
        %v521 = vadd.f32 %v369, %v520
        %v522 = vpop.f32.mrb[0].mxu0
        %523 = vmatprep.mubr.bf16.mxu0 0
        %524 = vmatmul.mubr.bf16.gmra.mrb[0].mxu0 %v341
        %v525 = vpop.f32.mrb[0].mxu0
        %v526 = vadd.f32 %v369, %v525
        %v527 = vpop.f32.mrb[0].mxu0
        %v528 = vpop.f32.mrb[0].mxu0
        %v529 = vadd.f32 %v369, %v528
        %v530 = vpop.f32.mrb[0].mxu0
        %531 = vmatprep.mubr.bf16.mxu0 0
        %532 = vmatmul.mubr.bf16.gmra.mrb[0].mxu0 %v342
        %v533 = vpop.f32.mrb[0].mxu0
        %v534 = vadd.f32 %v369, %v533
        %v535 = vpop.f32.mrb[0].mxu0
        %v536 = vpop.f32.mrb[0].mxu0
        %v537 = vadd.f32 %v369, %v536
        %v538 = vpop.f32.mrb[0].mxu0
        %539 = vmatprep.mubr.bf16.mxu0 0
        %540 = vmatmul.mubr.bf16.gmra.mrb[0].mxu0 %v343
        %v541 = vpop.f32.mrb[0].mxu0
        %v542 = vadd.f32 %v369, %v541
        %v543 = vpop.f32.mrb[0].mxu0
        %v544 = vpop.f32.mrb[0].mxu0
        %v545 = vadd.f32 %v369, %v544
        %v546 = vpop.f32.mrb[0].mxu0
        %547 = vmatprep.mubr.bf16.mxu0 0
        %548 = vmatmul.mubr.bf16.gmra.mrb[0].mxu0 %v344
        %v549 = vpop.f32.mrb[0].mxu0
        %v550 = vadd.f32 %v369, %v549
        %v551 = vpop.f32.mrb[0].mxu0
        %v552 = vpop.f32.mrb[0].mxu0
        %v553 = vadd.f32 %v369, %v552
        %v554 = vpop.f32.mrb[0].mxu0
        %555 = vmatprep.mubr.bf16.mxu0 0
        %556 = vmatmul.mubr.bf16.gmra.mrb[0].mxu0 %v345
        %v557 = vpop.f32.mrb[0].mxu0
        %v558 = vadd.f32 %v369, %v557
        %v559 = vpop.f32.mrb[0].mxu0
        %v560 = vpop.f32.mrb[0].mxu0
        %v561 = vadd.f32 %v369, %v560
        %v562 = vpop.f32.mrb[0].mxu0
        %563 = vmatprep.mubr.bf16.mxu0 0
        %564 = vmatmul.mubr.bf16.gmra.mrb[0].mxu0 %v346
        %v565 = vpop.f32.mrb[0].mxu0
        %v566 = vadd.f32 %v369, %v565
        %v567 = vpop.f32.mrb[0].mxu0
        %v568 = vpop.f32.mrb[0].mxu0
        %v569 = vadd.f32 %v369, %v568
        %v570 = vpop.f32.mrb[0].mxu0
        %571 = vmatprep.mubr.bf16.mxu0 0
        %572 = vmatmul.mubr.bf16.gmra.mrb[0].mxu0 %v347
        %v573 = vpop.f32.mrb[0].mxu0
        %v574 = vadd.f32 %v369, %v573
        %v575 = vpop.f32.mrb[0].mxu0
        %v576 = vpop.f32.mrb[0].mxu0
        %v577 = vadd.f32 %v369, %v576
        %v578 = vpop.f32.mrb[0].mxu0
        %579 = vdwg.mxu0
        %v580 = vpack.c.bf16 %v457, %v454
        %v581 = vpack.c.bf16 %v465, %v462
        %v582 = vpack.c.bf16 %v473, %v470
        %v583 = vpack.c.bf16 %v481, %v478
        %v584 = vpack.c.bf16 %v489, %v486
        %v585 = vpack.c.bf16 %v497, %v494
        %v586 = vpack.c.bf16 %v505, %v502
        %v587 = vpack.c.bf16 %v513, %v510
        %v588 = vpack.c.bf16 %v521, %v518
        %v589 = vpack.c.bf16 %v529, %v526
        %v590 = vpack.c.bf16 %v537, %v534
        %v591 = vpack.c.bf16 %v545, %v542
        %v592 = vpack.c.bf16 %v553, %v550
        %v593 = vpack.c.bf16 %v561, %v558
        %v594 = vpack.c.bf16 %v569, %v566
        %v595 = vpack.c.bf16 %v577, %v574
        %v612 = vunpack.c.l.b16 %v580
        %v613 = vunpack.c.h.b16 %v580
        %v614 = vunpack.c.l.b16 %v581
        %v615 = vunpack.c.h.b16 %v581
        %v616 = vunpack.c.l.b16 %v582
        %v617 = vunpack.c.h.b16 %v582
        %v618 = vunpack.c.l.b16 %v583
        %v619 = vunpack.c.h.b16 %v583
        %v620 = vunpack.c.l.b16 %v584
        %v621 = vunpack.c.h.b16 %v584
        %v622 = vunpack.c.l.b16 %v585
        %v623 = vunpack.c.h.b16 %v585
        %v624 = vunpack.c.l.b16 %v586
        %v625 = vunpack.c.h.b16 %v586
        %v626 = vunpack.c.l.b16 %v587
        %v627 = vunpack.c.h.b16 %v587
        %v628 = vunpack.c.l.b16 %v588
        %v629 = vunpack.c.h.b16 %v588
        %v630 = vunpack.c.l.b16 %v589
        %v631 = vunpack.c.h.b16 %v589
        %v632 = vunpack.c.l.b16 %v590
        %v633 = vunpack.c.h.b16 %v590
        %v634 = vunpack.c.l.b16 %v591
        %v635 = vunpack.c.h.b16 %v591
        %v636 = vunpack.c.l.b16 %v592
        %v637 = vunpack.c.h.b16 %v592
        %v638 = vunpack.c.l.b16 %v593
        %v639 = vunpack.c.h.b16 %v593
        %v640 = vunpack.c.l.b16 %v594
        %v641 = vunpack.c.h.b16 %v594
        %v642 = vunpack.c.l.b16 %v595
        %v643 = vunpack.c.h.b16 %v595
        %v644 = vpack.c.b16 %v612, %v612
        %v645 = vpack.c.b16 %v613, %v613
        %v646 = vpack.c.b16 %v614, %v614
        %v647 = vpack.c.b16 %v615, %v615
        %v648 = vpack.c.b16 %v616, %v616
        %v649 = vpack.c.b16 %v617, %v617
        %v650 = vpack.c.b16 %v618, %v618
        %v651 = vpack.c.b16 %v619, %v619
        %v652 = vpack.c.b16 %v620, %v620
        %v653 = vpack.c.b16 %v621, %v621
        %v654 = vpack.c.b16 %v622, %v622
        %v655 = vpack.c.b16 %v623, %v623
        %v656 = vpack.c.b16 %v624, %v624
        %v657 = vpack.c.b16 %v625, %v625
        %v658 = vpack.c.b16 %v626, %v626
        %v659 = vpack.c.b16 %v627, %v627
        %v660 = vpack.c.b16 %v628, %v628
        %v661 = vpack.c.b16 %v629, %v629
        %v662 = vpack.c.b16 %v630, %v630
        %v663 = vpack.c.b16 %v631, %v631
        %v664 = vpack.c.b16 %v632, %v632
        %v665 = vpack.c.b16 %v633, %v633
        %v666 = vpack.c.b16 %v634, %v634
        %v667 = vpack.c.b16 %v635, %v635
        %v668 = vpack.c.b16 %v636, %v636
        %v669 = vpack.c.b16 %v637, %v637
        %v670 = vpack.c.b16 %v638, %v638
        %v671 = vpack.c.b16 %v639, %v639
        %v672 = vpack.c.b16 %v640, %v640
        %v673 = vpack.c.b16 %v641, %v641
        %v674 = vpack.c.b16 %v642, %v642
        %v675 = vpack.c.b16 %v643, %v643
        %708 = vst [vmem:[%s163] sm:$0xf] %v644
        %709 = vst [vmem:[%s163 + $0x4] sm:$0xf] %v645
        %710 = vst [vmem:[%s163 + $0x8] sm:$0xf] %v646
        %711 = vst [vmem:[%s163 + $0xc] sm:$0xf] %v647
        %712 = vst [vmem:[%s163 + $0x10] sm:$0xf] %v648
        %713 = vst [vmem:[%s163 + $0x14] sm:$0xf] %v649
        %714 = vst [vmem:[%s163 + $0x18] sm:$0xf] %v650
        %715 = vst [vmem:[%s163 + $0x1c] sm:$0xf] %v651
        %716 = vst [vmem:[%s163 + $0x20] sm:$0xf] %v652
        %717 = vst [vmem:[%s163 + $0x24] sm:$0xf] %v653
        %718 = vst [vmem:[%s163 + $0x28] sm:$0xf] %v654
        %719 = vst [vmem:[%s163 + $0x2c] sm:$0xf] %v655
        %720 = vst [vmem:[%s163 + $0x30] sm:$0xf] %v656
        %721 = vst [vmem:[%s163 + $0x34] sm:$0xf] %v657
        %722 = vst [vmem:[%s163 + $0x38] sm:$0xf] %v658
        %723 = vst [vmem:[%s163 + $0x3c] sm:$0xf] %v659
        %724 = vst [vmem:[%s163 + $0x40] sm:$0xf] %v660
        %725 = vst [vmem:[%s163 + $0x44] sm:$0xf] %v661
        %726 = vst [vmem:[%s163 + $0x48] sm:$0xf] %v662
        %727 = vst [vmem:[%s163 + $0x4c] sm:$0xf] %v663
        %728 = vst [vmem:[%s163 + $0x50] sm:$0xf] %v664
        %729 = vst [vmem:[%s163 + $0x54] sm:$0xf] %v665
        %730 = vst [vmem:[%s163 + $0x58] sm:$0xf] %v666
        %731 = vst [vmem:[%s163 + $0x5c] sm:$0xf] %v667
        %732 = vst [vmem:[%s163 + $0x60] sm:$0xf] %v668
        %733 = vst [vmem:[%s163 + $0x64] sm:$0xf] %v669
        %734 = vst [vmem:[%s163 + $0x68] sm:$0xf] %v670
        %735 = vst [vmem:[%s163 + $0x6c] sm:$0xf] %v671
        %736 = vst [vmem:[%s163 + $0x70] sm:$0xf] %v672
        %737 = vst [vmem:[%s163 + $0x74] sm:$0xf] %v673
        %738 = vst [vmem:[%s163 + $0x78] sm:$0xf] %v674
        %739 = vst [vmem:[%s163 + $0x7c] sm:$0xf] %v675
        %s740 = sand.u32 %s93, 1
        %s741 = scalar_lea.sflag [#allocation4], %s740
        %s742 = sand.u32 %s93, 1
        %s743 = smul.addr %s742, 128
        %s744 = scalar_lea.vmem [#allocation3], %s743
        // Predicated region
        $region33: #{tpu_custom_call.1} parent=31 // pred_check
          %p745 = pneg %p103
        $region34: #{tpu_custom_call.1} parent=31 // pred_check_branch
          %747 = sbr.rel (%p745) target = $region36
        $region35: #{tpu_custom_call.1} parent=31 // pred_region
          %s749 = ssub.s32 2048, 2048
          %750 = vsyncadd %s741, %s749
          %s751 = smul.addr %s17, 32
          %s752 = smul.addr %s751, 64
          %s753 = scalar_lea.hbm %s3, %s752
          %s754 = sshll.u32 %s744, 4
          %s755 = int_to_ptr.vmem [resolvable:$true] %s754
          %760 = dma.vmem_to_hbm [thread:$0]  %s755, 2048, %s753, %s741, 64, 64, 4
        $region36: #{tpu_custom_call.1} parent=31 // pred_fallthru
          _
      $region32: #{tpu_custom_call.1} parent=5 // pred_fallthru
        _
      %p761 = scmp.le.s32.totalorder 2, %s12
      // Predicated region
      $region37: #{tpu_custom_call.1} parent=5 // pred_check
        %p762 = pneg %p761
      $region38: #{tpu_custom_call.1} parent=5 // pred_check_branch
        %764 = sbr.rel (%p762) target = $region40
      $region39: #{tpu_custom_call.1} parent=5 // pred_region
        %s765 = ssub.s32 %s12, 2
        // Predicated region
        $region41: #{tpu_custom_call.1} parent=39 // pred_check
          %p766 = pneg %p109
        $region42: #{tpu_custom_call.1} parent=39 // pred_check_branch
          %768 = sbr.rel (%p766) target = $region44
        $region43: #{tpu_custom_call.1} parent=39 // pred_region
          %s769 = sand.u32 %s94, 1
          %s770 = scalar_lea.sflag [#allocation4], %s769
          %s771 = sand.u32 %s94, 1
          %s772 = smul.addr %s771, 128
          %s773 = scalar_lea.vmem [#allocation3], %s772
          %774 = dma.done %s770, 2048
        $region44: #{tpu_custom_call.1} parent=39 // pred_fallthru
          _
      $region40: #{tpu_custom_call.1} parent=5 // pred_fallthru
        _
    $region6: #{tpu_custom_call.1} parent=1 // loop_footer
      %s16 = sadd.s32 1, %s12
    $region7: #{tpu_custom_call.1} parent=1 // loop_footer_branch
      %11 = sbr.rel target = $region3
    $region8: #{tpu_custom_call.1} parent=1 // loop_exit
      _
    %775 = vsyncpa [#allocation4], 1
    %s776 = scalar_lea.sflag [#allocation4], 1
    %777 = vsyncpa %s776, 1

</llo_original>
